<compile_context>
chip_gen: v7x
topology: tpu7x:2x2x1
jax: 0.10.0
libtpu: 0.0.40
codegen_flags: <defaults>
</compile_context>

<pallas_src>
import jax
import jax.numpy as jnp
from jax.experimental import pallas as pl
from jax.experimental.pallas import tpu as pltpu


def mlp_kernel(x_ref, w1_ref, b1_ref, w2_ref, b2_ref, o_ref):
    # x_ref : (TB, 4E)  pooled (max over W), ReLU'd, channel-major flat, bf16
    # w1_ref: (4E, E)   dense1 weight (W1.T), bf16
    # b1_ref: (1, E)    dense1 bias, f32
    # w2_ref: (E, Kp)   dense2 weight (W2.T, class dim padded to 128 lanes), bf16
    # b2_ref: (1, Kp)   dense2 bias, f32 (padded classes = -1e30 -> softmax ~0)
    # o_ref : (TB, Kp)  softmax probabilities, bf16

    act = x_ref[...]                                        # bf16, already ReLU'd

    # dense1: single (TB, 4E) @ (4E, E) contraction, f32 accumulation.
    h1 = jnp.dot(act, w1_ref[...], preferred_element_type=jnp.float32) + b1_ref[...]

    # TODO(synk): dropout (p=0.2) is the identity here (inference/eval mode).
    h1 = jnp.maximum(h1, 0.0).astype(jnp.bfloat16)          # ReLU, bf16 for MXU

    # dense2 into the lane-padded class dim.
    logits = jnp.dot(h1, w2_ref[...], preferred_element_type=jnp.float32) + b2_ref[...]

    # Numerically-stable softmax in f32; divide goes to the EUP slot.
    m = jnp.max(logits, axis=-1, keepdims=True)
    e = jnp.exp(logits - m)
    denom = jnp.sum(e, axis=-1, keepdims=True)
    o_ref[...] = (e * pl.reciprocal(denom, approx=True)).astype(o_ref.dtype)


def mlp_forward(x, w1, b1, w2, b2, *, block_b=2048):
    """x: (B, 4, H, W) NCHW.  w1: (E, 4E), b1: (E,), w2: (K, E), b2: (K,)."""
    B, C, H, W = x.shape
    E = w1.shape[0]           # num_embeddings
    K = w2.shape[0]           # num_class
    assert C == 4, "dense1 expects 4 * num_embeddings input features (C must be 4)"
    # TODO(synk): general adaptive H-binning (H != num_embeddings) not implemented.
    assert H == E, "kernel assumes H == num_embeddings (pool is identity over H)"
    CE = C * E

    # ---- wrapper-side plumbing (mem-bound XLA; keeps kernel I/O lane-dense) ----
    # AdaptiveMaxPool2d((E, 1)) with H == E: identity over H, max over W.
    # Flatten is channel-major (matches nn.Flatten on NCHW); the first ReLU is
    # fused here so the kernel ingests ReLU'd bf16 activations directly.
    pooled = jax.nn.relu(jnp.max(x, axis=-1)).reshape(B, CE).astype(jnp.bfloat16)

    # Lane-dense output: pad class dim to a multiple of 128.
    Kp = 128 * pl.cdiv(K, 128)

    # Batch tiling (TB multiple of 16: bf16 sublane packing):
    #   * tiles as large as block_b to amortize per-grid-step overhead (v5e/v6e),
    #   * but >= 2 (and even when possible) grid steps so v7x's 2 TCs both work.
    if B <= 16:
        n_tiles = 1
    else:
        n_tiles = max(1, pl.cdiv(B, block_b))
        if n_tiles == 1:
            n_tiles = 2                      # force a 2-way split for megacore
        elif n_tiles % 2:
            n_tiles += 1                     # keep the grid even
    TB = 16 * pl.cdiv(pl.cdiv(B, n_tiles), 16)
    B_pad = TB * pl.cdiv(B, TB)
    if B_pad != B:
        pooled = jnp.pad(pooled, ((0, B_pad - B), (0, 0)))

    # Weights pre-transposed so every in-kernel matmul is (TB, K) @ (K, N);
    # matmul operands in bf16 (halves weight DMA/VMEM), biases stay f32.
    w1_t = jnp.transpose(w1).astype(jnp.bfloat16)                                   # (4E, E)
    w2_t = jnp.pad(jnp.transpose(w2), ((0, 0), (0, Kp - K))).astype(jnp.bfloat16)   # (E, Kp)
    b1_2d = b1.reshape(1, E).astype(jnp.float32)
    b2_2d = jnp.pad(b2.reshape(1, K).astype(jnp.float32),
                    ((0, 0), (0, Kp - K)), constant_values=-1e30)                   # (1, Kp)

    # Note: the (TB, 4E) input block keeps 4E as the full last dim (legal even when
    # < 128 lanes); padding it to 128 would only double HBM traffic with zeros.

    grid = (B_pad // TB,)
    resident = dict(pipeline_mode=pl.Buffered(1))   # constant-index operands: 1 buffer
    out = pl.pallas_call(
        mlp_kernel,
        out_shape=jax.ShapeDtypeStruct((B_pad, Kp), jnp.bfloat16),
        grid_spec=pltpu.PrefetchScalarGridSpec(
            num_scalar_prefetch=0,
            grid=grid,
            in_specs=[
                pl.BlockSpec((TB, CE), lambda i: (i, 0)),              # activations
                pl.BlockSpec((CE, E), lambda i: (0, 0), **resident),   # weights resident
                pl.BlockSpec((1, E), lambda i: (0, 0), **resident),
                pl.BlockSpec((E, Kp), lambda i: (0, 0), **resident),
                pl.BlockSpec((1, Kp), lambda i: (0, 0), **resident),
            ],
            out_specs=pl.BlockSpec((TB, Kp), lambda i: (i, 0)),
        ),
        compiler_params=pltpu.CompilerParams(
            dimension_semantics=("parallel",),      # shard batch tiles across TCs (v7x)
            vmem_limit_bytes=32 * 1024 * 1024,      # v7x scoped default; raises v5e's
        ),
    )(pooled, w1_t, b1_2d, w2_t, b2_2d)

    return out[:B, :K]


def mlp_reference(x, w1, b1, w2, b2):
    """Pure-JAX f32 reference mirroring the PyTorch forward (eval mode)."""
    pooled = jnp.max(x, axis=-1)                       # AdaptiveMaxPool2d((H,1)), H==E
    flat = pooled.reshape(x.shape[0], -1)              # Flatten (channel-major)
    h = jax.nn.relu(flat)
    h = jax.nn.relu(h @ w1.T + b1)
    return jax.nn.softmax(h @ w2.T + b2, axis=-1)


if __name__ == "__main__":
    B, C, E, W, K = 2, 4, 16, 16, 8   # batch, channels, num_embeddings, width, num_class

    key = jax.random.PRNGKey(0)
    kx, k1, k2, k3, k4 = jax.random.split(key, 5)

    x = jax.random.normal(kx, (B, C, E, W), dtype=jnp.float32)

    # Deterministic PyTorch-style Linear init: U(-1/sqrt(fan_in), 1/sqrt(fan_in)).
    bound1 = 1.0 / jnp.sqrt(4.0 * E)
    w1 = jax.random.uniform(k1, (E, 4 * E), jnp.float32, -bound1, bound1)
    b1 = jax.random.uniform(k2, (E,), jnp.float32, -bound1, bound1)
    bound2 = 1.0 / jnp.sqrt(float(E))
    w2 = jax.random.uniform(k3, (K, E), jnp.float32, -bound2, bound2)
    b2 = jax.random.uniform(k4, (K,), jnp.float32, -bound2, bound2)

    out = mlp_forward(x, w1, b1, w2, b2)
    out = jax.block_until_ready(out)

    ref = mlp_reference(x, w1, b1, w2, b2)
    assert out.shape == (B, K)
    # bf16 activations/weights/output + approx reciprocal in the softmax loosen
    # tolerance vs. the pure-f32 reference (probabilities are in [0, 1]).
    assert jnp.allclose(out.astype(jnp.float32), ref, atol=2e-2, rtol=2e-2)

    print("KERNEL_OK")
</pallas_src>

<mosaic_0001>
module attributes {stable_mosaic.version = 11 : i64} {
  func.func @mlp_kernel(%arg0: i32, %arg1: memref<16x64xbf16, #tpu.memory_space<vmem>>, %arg2: memref<64x16xbf16, #tpu.memory_space<vmem>>, %arg3: memref<1x16xf32, #tpu.memory_space<vmem>>, %arg4: memref<16x128xbf16, #tpu.memory_space<vmem>>, %arg5: memref<1x128xf32, #tpu.memory_space<vmem>>, %arg6: memref<16x128xbf16, #tpu.memory_space<vmem>>) attributes {dimension_semantics = [#tpu.dimension_semantics<parallel>], iteration_bounds = array<i64: 1>, scalar_prefetch = 0 : i64, scratch_operands = 0 : i64, tpu.core_type = #tpu.core_type<tc>, window_params = [{transform_indices = @transform_0, window_bounds = array<i64: 16, 64>}, {pipeline_mode = #tpu.pipeline_mode<synchronous>, transform_indices = @transform_1, window_bounds = array<i64: 64, 16>}, {pipeline_mode = #tpu.pipeline_mode<synchronous>, transform_indices = @transform_2, window_bounds = array<i64: 1, 16>}, {pipeline_mode = #tpu.pipeline_mode<synchronous>, transform_indices = @transform_3, window_bounds = array<i64: 16, 128>}, {pipeline_mode = #tpu.pipeline_mode<synchronous>, transform_indices = @transform_4, window_bounds = array<i64: 1, 128>}, {transform_indices = @transform_5, window_bounds = array<i64: 16, 128>}]} {
    %c0 = arith.constant 0 : index
    %c0_0 = arith.constant 0 : index
    %0 = vector.load %arg1[%c0, %c0_0] : memref<16x64xbf16, #tpu.memory_space<vmem>>, vector<16x64xbf16>
    %c0_1 = arith.constant 0 : index
    %c0_2 = arith.constant 0 : index
    %1 = vector.load %arg2[%c0_1, %c0_2] : memref<64x16xbf16, #tpu.memory_space<vmem>>, vector<64x16xbf16>
    %cst = arith.constant dense<0.000000e+00> : vector<16x16xf32>
    %2 = tpu.matmul %0, %1, %cst {dimension_numbers = #tpu.dot_dimension_numbers<[1], [0], [0], [1], [0, 0, 1, 1], [], []>} : vector<16x64xbf16>, vector<64x16xbf16>, vector<16x16xf32> -> vector<16x16xf32>
    %c0_3 = arith.constant 0 : index
    %c0_4 = arith.constant 0 : index
    %3 = vector.load %arg3[%c0_3, %c0_4] : memref<1x16xf32, #tpu.memory_space<vmem>>, vector<1x16xf32>
    %4 = vector.broadcast %3 : vector<1x16xf32> to vector<16x16xf32>
    %5 = arith.addf %2, %4 : vector<16x16xf32>
    %cst_5 = arith.constant 0.000000e+00 : f32
    %6 = vector.broadcast %cst_5 : f32 to vector<16x16xf32>
    %7 = arith.maximumf %5, %6 : vector<16x16xf32>
    %8 = arith.truncf %7 : vector<16x16xf32> to vector<16x16xbf16>
    %c0_6 = arith.constant 0 : index
    %c0_7 = arith.constant 0 : index
    %9 = vector.load %arg4[%c0_6, %c0_7] : memref<16x128xbf16, #tpu.memory_space<vmem>>, vector<16x128xbf16>
    %cst_8 = arith.constant dense<0.000000e+00> : vector<16x128xf32>
    %10 = tpu.matmul %8, %9, %cst_8 {dimension_numbers = #tpu.dot_dimension_numbers<[1], [0], [0], [1], [0, 0, 1, 1], [], []>} : vector<16x16xbf16>, vector<16x128xbf16>, vector<16x128xf32> -> vector<16x128xf32>
    %c0_9 = arith.constant 0 : index
    %c0_10 = arith.constant 0 : index
    %11 = vector.load %arg5[%c0_9, %c0_10] : memref<1x128xf32, #tpu.memory_space<vmem>>, vector<1x128xf32>
    %12 = vector.broadcast %11 : vector<1x128xf32> to vector<16x128xf32>
    %13 = arith.addf %10, %12 : vector<16x128xf32>
    %cst_11 = arith.constant dense<0xFF800000> : vector<16xf32>
    %14 = vector.multi_reduction <maximumf>, %13, %cst_11 [1] : vector<16x128xf32> to vector<16xf32>
    %15 = vector.shape_cast %14 : vector<16xf32> to vector<16x1xf32>
    %16 = vector.broadcast %15 : vector<16x1xf32> to vector<16x128xf32>
    %17 = arith.subf %13, %16 : vector<16x128xf32>
    %18 = math.exp %17 : vector<16x128xf32>
    %cst_12 = arith.constant dense<0.000000e+00> : vector<16xf32>
    %19 = vector.multi_reduction <add>, %18, %cst_12 [1] : vector<16x128xf32> to vector<16xf32>
    %20 = vector.shape_cast %19 : vector<16xf32> to vector<16x1xf32>
    %21 = tpu.reciprocal %20 {approx = true} : vector<16x1xf32> -> vector<16x1xf32>
    %22 = vector.broadcast %21 : vector<16x1xf32> to vector<16x128xf32>
    %23 = arith.mulf %18, %22 : vector<16x128xf32>
    %24 = arith.truncf %23 : vector<16x128xf32> to vector<16x128xbf16>
    %c0_13 = arith.constant 0 : index
    %c0_14 = arith.constant 0 : index
    %25 = vector.load %arg6[%c0_13, %c0_14] : memref<16x128xbf16, #tpu.memory_space<vmem>>, vector<16x128xbf16>
    tpu.vector_store %arg6[%c0_13, %c0_14], %24 {strides = array<i32>} : memref<16x128xbf16, #tpu.memory_space<vmem>>, vector<16x128xbf16>,
    return
  }
  func.func @transform_0(%arg0: i32) -> (i32, i32) {
    %c0_i32 = arith.constant 0 : i32
    %c0_i32_0 = arith.constant 0 : i32
    return %arg0, %c0_i32 : i32, i32
  }
  func.func @transform_1(%arg0: i32) -> (i32, i32) {
    %c0_i32 = arith.constant 0 : i32
    %c0_i32_0 = arith.constant 0 : i32
    %c0_i32_1 = arith.constant 0 : i32
    return %c0_i32, %c0_i32_0 : i32, i32
  }
  func.func @transform_2(%arg0: i32) -> (i32, i32) {
    %c0_i32 = arith.constant 0 : i32
    %c0_i32_0 = arith.constant 0 : i32
    %c0_i32_1 = arith.constant 0 : i32
    return %c0_i32, %c0_i32_0 : i32, i32
  }
  func.func @transform_3(%arg0: i32) -> (i32, i32) {
    %c0_i32 = arith.constant 0 : i32
    %c0_i32_0 = arith.constant 0 : i32
    %c0_i32_1 = arith.constant 0 : i32
    return %c0_i32, %c0_i32_0 : i32, i32
  }
  func.func @transform_4(%arg0: i32) -> (i32, i32) {
    %c0_i32 = arith.constant 0 : i32
    %c0_i32_0 = arith.constant 0 : i32
    %c0_i32_1 = arith.constant 0 : i32
    return %c0_i32, %c0_i32_0 : i32, i32
  }
  func.func @transform_5(%arg0: i32) -> (i32, i32) {
    %c0_i32 = arith.constant 0 : i32
    %c0_i32_0 = arith.constant 0 : i32
    return %arg0, %c0_i32 : i32, i32
  }
}

</mosaic_0001>

<llo_original>
// kernel: tpu_custom_call.1
$region0: #{tpu_custom_call.1}
  #allocation0 [shape = 'u32[]', space=smem, size = 0x4, offset = 0x4, fixed_abs, tag = 'smem constant byte address 0x4 - core index']
  #allocation1 [shape = 'u32[144,128]{1,0:T(1,128)}', space=vmem, size = 0x12000, scoped, tag = 'internal scratch']
  %s0 = inlined_call_operand.vmem [shape: bf16[16,64], index: 0, kind: input, shape index: {}]
  %s1 = inlined_call_operand.vmem [shape: bf16[64,16], index: 1, kind: input, shape index: {}]
  %s2 = inlined_call_operand.vmem [shape: f32[1,16], index: 2, kind: input, shape index: {}]
  %s3 = inlined_call_operand.vmem [shape: bf16[16,128], index: 3, kind: input, shape index: {}]
  %s4 = inlined_call_operand.vmem [shape: f32[1,128], index: 4, kind: input, shape index: {}]
  %s5 = inlined_call_operand.hbm [shape: bf16[16,128], index: 5, kind: output, shape index: {}]
  %s6 = sld [smem:[#allocation0]]
  $region30: #{tpu_custom_call.1} parent=0
    _
  %s8 = ssub.s32 1, %s6
  %s9 = scalar_select 0, %s8, %s6
  $region1: #{tpu_custom_call.1} parent=0
    #allocation2 [shape = 'u8[4096]{0}', space=vmem, size = 0x1000, scoped, tag = 'output window, operand 0, single buffered']
    #allocation3 [shape = 's32[1]{0}', space=sflag, size = 0x4, scoped, tag = 'scoped memory for tpu_custom_call.1']
    %10 = vsyncpa [#allocation3], 0
    // Predicated region
    $region2: #{tpu_custom_call.1} parent=1 // pred_check
      _
    $region3: #{tpu_custom_call.1} parent=1 // pred_check_branch
      %12 = sbr.rel (0) target = $region5
    $region4: #{tpu_custom_call.1} parent=1 // pred_region
      _
    $region5: #{tpu_custom_call.1} parent=1 // pred_fallthru
      _
    // Predicated region
    $region6: #{tpu_custom_call.1} parent=1 // pred_check
      _
    $region7: #{tpu_custom_call.1} parent=1 // pred_check_branch
      %14 = sbr.rel (0) target = $region9
    $region8: #{tpu_custom_call.1} parent=1 // pred_region
      _
    $region9: #{tpu_custom_call.1} parent=1 // pred_fallthru
      _
    // Predicated region
    $region10: #{tpu_custom_call.1} parent=1 // pred_check
      _
    $region11: #{tpu_custom_call.1} parent=1 // pred_check_branch
      %16 = sbr.rel (0) target = $region13
    $region12: #{tpu_custom_call.1} parent=1 // pred_region
      _
    $region13: #{tpu_custom_call.1} parent=1 // pred_fallthru
      _
    // Predicated region
    $region14: #{tpu_custom_call.1} parent=1 // pred_check
      _
    $region15: #{tpu_custom_call.1} parent=1 // pred_check_branch
      %18 = sbr.rel (0) target = $region17
    $region16: #{tpu_custom_call.1} parent=1 // pred_region
      _
    $region17: #{tpu_custom_call.1} parent=1 // pred_fallthru
      _
    // Predicated region
    $region18: #{tpu_custom_call.1} parent=1 // pred_check
      _
    $region19: #{tpu_custom_call.1} parent=1 // pred_check_branch
      %20 = sbr.rel (0) target = $region21
    $region20: #{tpu_custom_call.1} parent=1 // pred_region
      _
    $region21: #{tpu_custom_call.1} parent=1 // pred_fallthru
      _
    %v22 = vld [vmem:[%s0] sm:$0xf]
    %v23 = vld [vmem:[%s0 + $0x4] sm:$0xf]
    %v24 = vld [vmem:[%s1] sm:$0xf]
    %v25 = vld [vmem:[%s1 + $0x4] sm:$0xf]
    %v26 = vld [vmem:[%s1 + $0x8] sm:$0xf]
    %v27 = vld [vmem:[%s1 + $0xc] sm:$0xf]
    %v28 = vld [vmem:[%s1 + $0x10] sm:$0xf]
    %v29 = vld [vmem:[%s1 + $0x14] sm:$0xf]
    %v30 = vld [vmem:[%s1 + $0x18] sm:$0xf]
    %v31 = vld [vmem:[%s1 + $0x1c] sm:$0xf]
    %v32 = vld [vmem:[%s2] sm:$0x1]
    %v34 = vlaneseq
    %v35 = vshrl.u32 %v34, 7
    %v36 = vsub.s32 0, %v35
    %v37 = vrot.slane %v32, %v36
    %v41 = vunpack.c.l.b16 %v22
    %v42 = vunpack.c.l.b16 %v23
    %v43 = vpack.c.b16 %v42, %v41
    %v52 = vunpack.c.l.b16 %v24
    %v53 = vunpack.c.l.b16 %v25
    %v54 = vunpack.c.l.b16 %v26
    %v55 = vunpack.c.l.b16 %v27
    %v56 = vunpack.c.l.b16 %v28
    %v57 = vunpack.c.l.b16 %v29
    %v58 = vunpack.c.l.b16 %v30
    %v59 = vunpack.c.l.b16 %v31
    %v60 = vpack.c.b16 %v53, %v52
    %v61 = vpack.c.b16 %v55, %v54
    %v62 = vpack.c.b16 %v57, %v56
    %v63 = vpack.c.b16 %v59, %v58
    %vm68 = vcmask 523264
    %v70 = vsel %vm68, %v43, 0
    %72 = vmatprep.subr.bf16.mxu0 0
    %73 = vmatpush1.bf16.msra.mxu0 %v60
    %74 = vmatprep.subr.bf16.mxu0 0
    %75 = vmatpush1.bf16.msra.mxu0 %v61
    %76 = vmatprep.subr.bf16.mxu0 0
    %77 = vmatpush1.bf16.msra.mxu0 %v62
    %78 = vmatprep.subr.bf16.mxu0 0
    %79 = vmatpush1.bf16.msra.mxu0 %v63
    %80 = vmatprep.subr.bf16.mxu0 0
    %81 = vmatpush1.bf16.msra.mxu0 0
    %82 = vmatprep.subr.bf16.mxu0 0
    %83 = vmatpush1.bf16.msra.mxu0 0
    %84 = vmatprep.subr.bf16.mxu0 0
    %85 = vmatpush1.bf16.msra.mxu0 0
    %86 = vmatprep.subr.bf16.mxu0 0
    %87 = vmatpush1.bf16.msra.mxu0 0
    %88 = vmatprep.subr.bf16.mxu0 0
    %89 = vmatpush1.bf16.msra.mxu0 0
    %90 = vmatprep.subr.bf16.mxu0 0
    %91 = vmatpush1.bf16.msra.mxu0 0
    %92 = vmatprep.subr.bf16.mxu0 0
    %93 = vmatpush1.bf16.msra.mxu0 0
    %94 = vmatprep.subr.bf16.mxu0 0
    %95 = vmatpush1.bf16.msra.mxu0 0
    %96 = vmatprep.subr.bf16.mxu0 0
    %97 = vmatpush1.bf16.msra.mxu0 0
    %98 = vmatprep.subr.bf16.mxu0 0
    %99 = vmatpush1.bf16.msra.mxu0 0
    %100 = vmatprep.subr.bf16.mxu0 0
    %101 = vmatpush1.bf16.msra.mxu0 0
    %102 = vmatprep.subr.bf16.mxu0 0
    %103 = vmatpush1.bf16.msra.mxu0 0
    %104 = vmatprep.mubr.bf16.mxu0 0
    %105 = vmatmul.mubr.bf16.gmra.mrb[0].mxu0 %v70
    %v106 = vpop.f32.mrb[0].mxu0
    %v107 = vadd.f32 %v37, %v106
    %v108 = vpop.f32.mrb[0].mxu0
    %v109 = vpop.f32.mrb[0].mxu0
    %v110 = vadd.f32 %v37, %v109
    %v111 = vpop.f32.mrb[0].mxu0
    %112 = vdwg.mxu0
    %v113 = vmax.f32 %v107, 0.0
    %v114 = vmax.f32 %v110, 0.0
    %v115 = vpack.c.bf16 %v114, %v113
    %v116 = vld [vmem:[%s3] sm:$0xf]
    %v117 = vld [vmem:[%s3 + $0x4] sm:$0xf]
    %v118 = vld [vmem:[%s4] sm:$0x1]
    %v120 = vlaneseq
    %v121 = vshrl.u32 %v120, 7
    %v122 = vsub.s32 0, %v121
    %v123 = vrot.slane %v118, %v122
    %v127 = vunpack.c.l.b16 %v116
    %v128 = vunpack.c.l.b16 %v117
    %v129 = vpack.c.b16 %v128, %v127
    %vm131 = vcmask 130048
    %v133 = vsel %vm131, %v115, 0
    %135 = vmatprep.subr.bf16.mxu0 0
    %136 = vmatpush1.bf16.msra.mxu0 %v129
    %137 = vmatprep.subr.bf16.mxu0 0
    %138 = vmatpush1.bf16.msra.mxu0 0
    %139 = vmatprep.subr.bf16.mxu0 0
    %140 = vmatpush1.bf16.msra.mxu0 0
    %141 = vmatprep.subr.bf16.mxu0 0
    %142 = vmatpush1.bf16.msra.mxu0 0
    %143 = vmatprep.subr.bf16.mxu0 0
    %144 = vmatpush1.bf16.msra.mxu0 0
    %145 = vmatprep.subr.bf16.mxu0 0
    %146 = vmatpush1.bf16.msra.mxu0 0
    %147 = vmatprep.subr.bf16.mxu0 0
    %148 = vmatpush1.bf16.msra.mxu0 0
    %149 = vmatprep.subr.bf16.mxu0 0
    %150 = vmatpush1.bf16.msra.mxu0 0
    %151 = vmatprep.subr.bf16.mxu0 0
    %152 = vmatpush1.bf16.msra.mxu0 0
    %153 = vmatprep.subr.bf16.mxu0 0
    %154 = vmatpush1.bf16.msra.mxu0 0
    %155 = vmatprep.subr.bf16.mxu0 0
    %156 = vmatpush1.bf16.msra.mxu0 0
    %157 = vmatprep.subr.bf16.mxu0 0
    %158 = vmatpush1.bf16.msra.mxu0 0
    %159 = vmatprep.subr.bf16.mxu0 0
    %160 = vmatpush1.bf16.msra.mxu0 0
    %161 = vmatprep.subr.bf16.mxu0 0
    %162 = vmatpush1.bf16.msra.mxu0 0
    %163 = vmatprep.subr.bf16.mxu0 0
    %164 = vmatpush1.bf16.msra.mxu0 0
    %165 = vmatprep.subr.bf16.mxu0 0
    %166 = vmatpush1.bf16.msra.mxu0 0
    %167 = vmatprep.mubr.bf16.mxu0 0
    %168 = vmatmul.mubr.bf16.gmra.mrb[0].mxu0 %v133
    %v169 = vpop.f32.mrb[0].mxu0
    %v170 = vadd.f32 %v123, %v169
    %v171 = vpop.f32.mrb[0].mxu0
    %v172 = vpop.f32.mrb[0].mxu0
    %v173 = vadd.f32 %v123, %v172
    %v174 = vpop.f32.mrb[0].mxu0
    %175 = vdwg.mxu0
    %176 = vmax.xlane.f32.xlu0 %v170
    %v177 = vpop.xlane.xlu0 %176
    %178 = vmax.xlane.f32.xlu0 %v173
    %v179 = vpop.xlane.xlu0 %178
    %v180 = vsub.f32 %v170, %v177
    %v181 = vsub.f32 %v173, %v179
    %v182 = vmul.f32 %v180, 1.442695
    %v183 = vpow.pop %v182
    %v184 = vmul.f32 %v181, 1.442695
    %v185 = vpow.pop %v184
    %186 = vadd.xlane.f32.xlu0 %v183
    %v187 = vpop.xlane.xlu0 %186
    %188 = vadd.xlane.f32.xlu0 %v185
    %v189 = vpop.xlane.xlu0 %188
    %v190 = vrcp.pop %v187
    %v191 = vrcp.pop %v189
    %v192 = vmul.f32 %v183, %v190
    %v193 = vmul.f32 %v185, %v191
    %v194 = vpack.c.bf16 %v193, %v192
    %v196 = vunpack.c.l.b16 %v194
    %v197 = vunpack.c.h.b16 %v194
    %v198 = vpack.c.b16 %v196, %v196
    %v199 = vpack.c.b16 %v197, %v197
    %202 = vst [vmem:[#allocation2] sm:$0xf] %v198
    %203 = vst [vmem:[#allocation2 + $0x4] sm:$0xf] %v199
    // Predicated region
    $region22: #{tpu_custom_call.1} parent=1 // pred_check
      _
    $region23: #{tpu_custom_call.1} parent=1 // pred_check_branch
      %205 = sbr.rel (0) target = $region25
    $region24: #{tpu_custom_call.1} parent=1 // pred_region
      %s207 = ssub.s32 128, 128
      %208 = vsyncadd [#allocation3], %s207
      %s209 = sshll.u32 [#allocation2], 4
      %s210 = int_to_ptr.vmem [resolvable:$true] %s209
      %215 = dma.vmem_to_hbm [thread:$0]  %s210, 128, %s5, [#allocation3], 64, 64, 4
    $region25: #{tpu_custom_call.1} parent=1 // pred_fallthru
      _
    // Predicated region
    $region26: #{tpu_custom_call.1} parent=1 // pred_check
      _
    $region27: #{tpu_custom_call.1} parent=1 // pred_check_branch
      %217 = sbr.rel (0) target = $region29
    $region28: #{tpu_custom_call.1} parent=1 // pred_region
      %218 = dma.done [#allocation3], 128
    $region29: #{tpu_custom_call.1} parent=1 // pred_fallthru
      _
    %219 = vsyncpa [#allocation3], 1

</llo_original>
